<compile_context>
chip_gen: v7x
topology: tpu7x:2x2x1
jax: 0.10.0
libtpu: 0.0.40
codegen_flags: <defaults>
</compile_context>

<pallas_src>
import functools

import jax
import jax.numpy as jnp
from jax.experimental import pallas as pl
from jax.experimental.pallas import tpu as pltpu

TN_MAX = 1024  # max pixel-tile width (lanes); 512-1024 keeps temporaries vreg-resident


def _round_up(x, m):
    return ((x + m - 1) // m) * m


def _choose_tile(hw):
    """Pick pixel-tile width TN.

    Prefer the largest 128-multiple divisor of hw (exact tiling: no ragged
    tail, no in-kernel mask, and no jnp.pad HBM copy).  Otherwise use a wide
    tile with a ragged last block handled by an in-kernel mask.
    Returns (tn, need_mask).
    """
    hw128 = _round_up(hw, 128)
    best_div = 0
    t = 128
    while t <= min(TN_MAX, hw128):
        if hw % t == 0:
            best_div = t
        t += 128
    if best_div >= 512 or (best_div > 0 and best_div == hw):
        return best_div, False
    tn = min(TN_MAX, hw128)
    return tn, (hw % tn) != 0


def _loss_stats_kernel(logits_ref, labels_ref, scal_ref, inter_ref, card_ref,
                       *, hw, need_mask):
    i = pl.program_id(1)
    C, tn = logits_ref.shape

    @pl.when(i == 0)
    def _init():
        scal_ref[...] = jnp.zeros_like(scal_ref)
        inter_ref[...] = jnp.zeros_like(inter_ref)
        card_ref[...] = jnp.zeros_like(card_ref)

    x = logits_ref[...].astype(jnp.float32)          # (C, TN)
    lbl = labels_ref[...]                            # (1, TN) int32

    if need_mask:
        # ragged last tile: neutralise unspecified out-of-bounds data
        lane = jax.lax.broadcasted_iota(jnp.int32, (1, tn), 1)
        valid = (i * tn + lane) < hw                 # (1, TN) bool
        x = jnp.where(valid, x, 0.0)
        lbl = jnp.where(valid, lbl, -1)              # -> onehot == 0 on padded lanes

    cls = jax.lax.broadcasted_iota(jnp.int32, (C, tn), 0)
    is_target = lbl == cls                           # (C, TN) bool
    onehot = is_target.astype(jnp.float32)

    # --- softmax statistics over the class (sublane) axis; no logp matrix ---
    m = jnp.max(x, axis=0, keepdims=True)
    z = x - m
    ez = jnp.exp(z)                                  # EUP exp
    sez = jnp.sum(ez, axis=0, keepdims=True)
    logsez = jnp.log(sez)                            # EUP log
    p = ez * pl.reciprocal(sez, approx=True)         # softmax probs (feeds dice)

    # --- SoftCrossEntropy (smooth_factor handled in the epilogue) ---
    nll = logsez - jnp.sum(onehot * z, axis=0, keepdims=True)      # (1, TN)
    smooth = C * logsez - jnp.sum(z, axis=0, keepdims=True)        # (1, TN)

    # --- Focal loss (per-class binary focal on logits, gamma=2, alpha=None) ---
    # stable BCE-with-logits: max(x,0) - x*t + log1p(exp(-|x|)); reuse e = exp(-|x|)
    e = jnp.exp(-jnp.abs(x))                                       # EUP exp
    bce = jnp.maximum(x, 0.0) - x * onehot + jnp.log1p(e)          # EUP log
    # pt = exp(-bce) = select(sign(x)==target, 1, e) / (1 + e)
    pt = jnp.where((x >= 0.0) == is_target, 1.0, e) * pl.reciprocal(1.0 + e,
                                                                    approx=True)
    one_m_pt = 1.0 - pt
    focal_row = jnp.sum(one_m_pt * one_m_pt * bce, axis=0, keepdims=True)  # (1, TN)

    if need_mask:
        vmask = valid.astype(jnp.float32)
        nll = nll * vmask
        smooth = smooth * vmask
        focal_row = focal_row * vmask
        p = p * vmask            # onehot is already zero on padded lanes

    # direct row-slice accumulation (no (8,TN) iota/select slab)
    scal_ref[0:1, :] += nll
    scal_ref[1:2, :] += smooth
    scal_ref[2:3, :] += focal_row

    # --- Dice statistics: intersection and merged cardinality ---
    inter_ref[...] += p * onehot
    card_ref[...] += p + onehot


def _prep(pred_nchw, label_nhw):
    """NCHW logits / NHW labels -> (B,C,HW) logits (native dtype, no pad), (B,1,HW) int32."""
    B, C, H, W = pred_nchw.shape
    hw = H * W
    tn, need_mask = _choose_tile(hw)
    logits = pred_nchw.reshape(B, C, hw)                 # free reshape, no HBM copy
    labels = label_nhw.reshape(B, 1, hw).astype(jnp.int32)
    return logits, labels, hw, tn, need_mask


def _seg_loss_stats(logits, labels, hw, tn, need_mask):
    """Run the fused-stats kernel; returns per-image lane-partial accumulators."""
    B, C, _ = logits.shape
    num_tiles = pl.cdiv(hw, tn)
    kernel = functools.partial(_loss_stats_kernel, hw=hw, need_mask=need_mask)

    out_shapes = (
        jax.ShapeDtypeStruct((B, 3, tn), jnp.float32),   # rows: nll / smooth / focal
        jax.ShapeDtypeStruct((B, C, tn), jnp.float32),   # dice intersection sum(p*onehot)
        jax.ShapeDtypeStruct((B, C, tn), jnp.float32),   # dice cardinality sum(p+onehot)
    )

    return pl.pallas_call(
        kernel,
        out_shape=out_shapes,
        grid=(B, num_tiles),
        in_specs=[
            pl.BlockSpec((None, C, tn), lambda b, i: (b, 0, i)),
            pl.BlockSpec((None, 1, tn), lambda b, i: (b, 0, i)),
        ],
        out_specs=(
            pl.BlockSpec((None, 3, tn), lambda b, i: (b, 0, 0)),
            pl.BlockSpec((None, C, tn), lambda b, i: (b, 0, 0)),
            pl.BlockSpec((None, C, tn), lambda b, i: (b, 0, 0)),
        ),
        compiler_params=pltpu.CompilerParams(
            # batch axis parallel (per-image resident accumulator slabs -> v7x
            # megacore sharding when B > 1); pixel-tile axis is the reduction.
            dimension_semantics=("parallel", "arbitrary")),
    )(logits, labels)


def _soft_cross_entropy(scal, n, c, smooth_factor=0.1):
    nll_mean = jnp.sum(scal[:, 0, :]) / n
    smooth_mean = jnp.sum(scal[:, 1, :]) / n
    return (1.0 - smooth_factor) * nll_mean + (smooth_factor / c) * smooth_mean


def _focal_loss(scal, n):
    # per-class mean over N pixels, summed over classes == total_sum / N
    return jnp.sum(scal[:, 2, :]) / n


def _dice_loss(inter, card, eps=1e-7):
    inter_c = jnp.sum(inter, axis=(0, 2))    # (C,)
    card_c = jnp.sum(card, axis=(0, 2))      # (C,)
    score = (2.0 * inter_c) / jnp.clip(card_c, eps, None)
    # softmax p > 0, so inter_c > 0 iff the class appears in the labels
    present = (inter_c > 0).astype(jnp.float32)
    return jnp.mean((1.0 - score) * present)


def _run_stats(pred, label):
    B, C, H, W = pred.shape
    logits, labels, hw, tn, need_mask = _prep(pred, label)
    scal, inter, card = _seg_loss_stats(logits, labels, hw, tn, need_mask)
    return scal, inter, card, B * H * W, C


def compute_losses_forward(opt, labels, outputs):
    """JAX/Pallas equivalent of compute_losses.forward."""
    dice_weight = opt["dice_weight"]
    layout_weight = opt["layout_weight"]
    loss_type = opt["loss_type"]
    roadlayout_loss_type = opt["roadLayout_loss_type"]

    losses = {"bev": jnp.float32(0.0), "layout": jnp.float32(0.0)}

    if "bev" in outputs:
        scal, inter, card, n, c = _run_stats(outputs["bev"], labels["bev"])
        dice = _dice_loss(inter, card)
        if loss_type == "focal":
            losses["bev"] = _focal_loss(scal, n) + dice_weight * dice
        else:
            losses["bev"] = _soft_cross_entropy(scal, n, c) + dice_weight * dice

    if "layout" in outputs:
        scal, inter, card, n, c = _run_stats(outputs["layout"], labels["layout"])
        if roadlayout_loss_type == "focal":
            losses["layout"] = _focal_loss(scal, n) + dice_weight * _dice_loss(inter, card)
        else:
            losses["layout"] = _soft_cross_entropy(scal, n, c)

    losses["loss"] = losses["bev"] + layout_weight * losses["layout"]
    return losses


if __name__ == "__main__":
    key = jax.random.PRNGKey(0)
    k1, k2, k3, k4 = jax.random.split(key, 4)

    B, H, W = 2, 16, 16
    C_BEV, C_LAYOUT = 4, 3

    bev_pred = jax.random.normal(k1, (B, C_BEV, H, W), dtype=jnp.float32)
    bev_label = jax.random.randint(k2, (B, H, W), 0, C_BEV, dtype=jnp.int32)
    layout_pred = jax.random.normal(k3, (B, C_LAYOUT, H, W), dtype=jnp.float32)
    layout_label = jax.random.randint(k4, (B, H, W), 0, C_LAYOUT, dtype=jnp.int32)

    opt = {
        "dice_weight": 1.0,
        "layout_weight": 5.0,
        "loss_type": "focal",          # bev uses focal + dice
        "roadLayout_loss_type": "ce",  # layout uses soft cross-entropy
    }
    labels = {"bev": bev_label, "layout": layout_label}
    outputs = {"bev": bev_pred, "layout": layout_pred}

    losses = compute_losses_forward(opt, labels, outputs)
    jax.block_until_ready(losses["loss"])
    print("KERNEL_OK")
</pallas_src>

<mosaic_0001>
module attributes {stable_mosaic.version = 11 : i64} {
  func.func @_loss_stats_kernel(%arg0: i32, %arg1: i32, %arg2: memref<1x4x256xf32, #tpu.memory_space<vmem>>, %arg3: memref<1x1x256xi32, #tpu.memory_space<vmem>>, %arg4: memref<1x3x256xf32, #tpu.memory_space<vmem>>, %arg5: memref<1x4x256xf32, #tpu.memory_space<vmem>>, %arg6: memref<1x4x256xf32, #tpu.memory_space<vmem>>) attributes {dimension_semantics = [#tpu.dimension_semantics<parallel>, #tpu.dimension_semantics<arbitrary>], iteration_bounds = array<i64: 2, 1>, scalar_prefetch = 0 : i64, scratch_operands = 0 : i64, tpu.core_type = #tpu.core_type<tc>, window_params = [{transform_indices = @transform_0, window_bounds = array<i64: 1, 4, 256>}, {transform_indices = @transform_1, window_bounds = array<i64: 1, 1, 256>}, {transform_indices = @transform_2, window_bounds = array<i64: 1, 3, 256>}, {transform_indices = @transform_3, window_bounds = array<i64: 1, 4, 256>}, {transform_indices = @transform_4, window_bounds = array<i64: 1, 4, 256>}]} {
    %c0_i32 = arith.constant 0 : i32
    %0 = arith.cmpi eq, %arg1, %c0_i32 : i32
    %1 = arith.extui %0 : i1 to i32
    %c0_i32_0 = arith.constant 0 : i32
    %2 = arith.cmpi ne, %1, %c0_i32_0 : i32
    scf.if %2 {
      %cst_46 = arith.constant 0.000000e+00 : f32
      %90 = vector.broadcast %cst_46 : f32 to vector<3x256xf32>
      %c0_47 = arith.constant 0 : index
      %c0_48 = arith.constant 0 : index
      %c0_49 = arith.constant 0 : index
      %91 = vector.load %arg4[%c0_47, %c0_48, %c0_49] : memref<1x3x256xf32, #tpu.memory_space<vmem>>, vector<1x3x256xf32>
      %92 = vector.shape_cast %91 : vector<1x3x256xf32> to vector<3x256xf32>
      %93 = vector.shape_cast %90 : vector<3x256xf32> to vector<1x3x256xf32>
      tpu.vector_store %arg4[%c0_47, %c0_48, %c0_49], %93 {strides = array<i32>} : memref<1x3x256xf32, #tpu.memory_space<vmem>>, vector<1x3x256xf32>,
      %cst_50 = arith.constant 0.000000e+00 : f32
      %94 = vector.broadcast %cst_50 : f32 to vector<4x256xf32>
      %c0_51 = arith.constant 0 : index
      %c0_52 = arith.constant 0 : index
      %c0_53 = arith.constant 0 : index
      %95 = vector.load %arg5[%c0_51, %c0_52, %c0_53] : memref<1x4x256xf32, #tpu.memory_space<vmem>>, vector<1x4x256xf32>
      %96 = vector.shape_cast %95 : vector<1x4x256xf32> to vector<4x256xf32>
      %97 = vector.shape_cast %94 : vector<4x256xf32> to vector<1x4x256xf32>
      tpu.vector_store %arg5[%c0_51, %c0_52, %c0_53], %97 {strides = array<i32>} : memref<1x4x256xf32, #tpu.memory_space<vmem>>, vector<1x4x256xf32>,
      %cst_54 = arith.constant 0.000000e+00 : f32
      %98 = vector.broadcast %cst_54 : f32 to vector<4x256xf32>
      %c0_55 = arith.constant 0 : index
      %c0_56 = arith.constant 0 : index
      %c0_57 = arith.constant 0 : index
      %99 = vector.load %arg6[%c0_55, %c0_56, %c0_57] : memref<1x4x256xf32, #tpu.memory_space<vmem>>, vector<1x4x256xf32>
      %100 = vector.shape_cast %99 : vector<1x4x256xf32> to vector<4x256xf32>
      %101 = vector.shape_cast %98 : vector<4x256xf32> to vector<1x4x256xf32>
      tpu.vector_store %arg6[%c0_55, %c0_56, %c0_57], %101 {strides = array<i32>} : memref<1x4x256xf32, #tpu.memory_space<vmem>>, vector<1x4x256xf32>,
    } else {
    }
    %c0 = arith.constant 0 : index
    %c0_1 = arith.constant 0 : index
    %c0_2 = arith.constant 0 : index
    %3 = vector.load %arg2[%c0, %c0_1, %c0_2] : memref<1x4x256xf32, #tpu.memory_space<vmem>>, vector<1x4x256xf32>
    %4 = vector.shape_cast %3 : vector<1x4x256xf32> to vector<4x256xf32>
    %c0_3 = arith.constant 0 : index
    %c0_4 = arith.constant 0 : index
    %c0_5 = arith.constant 0 : index
    %5 = vector.load %arg3[%c0_3, %c0_4, %c0_5] : memref<1x1x256xi32, #tpu.memory_space<vmem>>, vector<1x1x256xi32>
    %6 = vector.shape_cast %5 : vector<1x1x256xi32> to vector<1x256xi32>
    %7 = tpu.iota {dimensions = array<i32: 0>} : vector<4x256xi32>
    %8 = vector.broadcast %6 : vector<1x256xi32> to vector<4x256xi32>
    %9 = arith.cmpi eq, %8, %7 : vector<4x256xi32>
    %10 = arith.extui %9 : vector<4x256xi1> to vector<4x256xi32>
    %11 = arith.sitofp %10 : vector<4x256xi32> to vector<4x256xf32>
    %cst = arith.constant dense<0xFF800000> : vector<256xf32>
    %12 = vector.multi_reduction <maximumf>, %4, %cst [0] : vector<4x256xf32> to vector<256xf32>
    %13 = vector.shape_cast %12 : vector<256xf32> to vector<1x256xf32>
    %14 = vector.broadcast %13 : vector<1x256xf32> to vector<4x256xf32>
    %15 = arith.subf %4, %14 : vector<4x256xf32>
    %16 = math.exp %15 : vector<4x256xf32>
    %cst_6 = arith.constant dense<0.000000e+00> : vector<256xf32>
    %17 = vector.multi_reduction <add>, %16, %cst_6 [0] : vector<4x256xf32> to vector<256xf32>
    %18 = vector.shape_cast %17 : vector<256xf32> to vector<1x256xf32>
    %19 = math.log %18 : vector<1x256xf32>
    %20 = tpu.reciprocal %18 {approx = true} : vector<1x256xf32> -> vector<1x256xf32>
    %21 = vector.broadcast %20 : vector<1x256xf32> to vector<4x256xf32>
    %22 = arith.mulf %16, %21 : vector<4x256xf32>
    %23 = arith.mulf %11, %15 : vector<4x256xf32>
    %cst_7 = arith.constant dense<0.000000e+00> : vector<256xf32>
    %24 = vector.multi_reduction <add>, %23, %cst_7 [0] : vector<4x256xf32> to vector<256xf32>
    %25 = vector.shape_cast %24 : vector<256xf32> to vector<1x256xf32>
    %26 = arith.subf %19, %25 : vector<1x256xf32>
    %cst_8 = arith.constant 4.000000e+00 : f32
    %27 = vector.broadcast %cst_8 : f32 to vector<1x256xf32>
    %28 = arith.mulf %27, %19 : vector<1x256xf32>
    %cst_9 = arith.constant dense<0.000000e+00> : vector<256xf32>
    %29 = vector.multi_reduction <add>, %15, %cst_9 [0] : vector<4x256xf32> to vector<256xf32>
    %30 = vector.shape_cast %29 : vector<256xf32> to vector<1x256xf32>
    %31 = arith.subf %28, %30 : vector<1x256xf32>
    %32 = math.absf %4 : vector<4x256xf32>
    %cst_10 = arith.constant 0.000000e+00 : f32
    %33 = vector.broadcast %cst_10 : f32 to vector<4x256xf32>
    %34 = arith.subf %33, %32 : vector<4x256xf32>
    %35 = math.exp %34 : vector<4x256xf32>
    %cst_11 = arith.constant 0.000000e+00 : f32
    %36 = vector.broadcast %cst_11 : f32 to vector<4x256xf32>
    %37 = arith.maximumf %4, %36 : vector<4x256xf32>
    %38 = arith.mulf %4, %11 : vector<4x256xf32>
    %39 = arith.subf %37, %38 : vector<4x256xf32>
    %40 = math.log1p %35 : vector<4x256xf32>
    %41 = arith.addf %39, %40 : vector<4x256xf32>
    %cst_12 = arith.constant 0.000000e+00 : f32
    %42 = vector.broadcast %cst_12 : f32 to vector<4x256xf32>
    %43 = arith.cmpf oge, %4, %42 : vector<4x256xf32>
    %44 = arith.xori %43, %9 : vector<4x256xi1>
    %cst_13 = arith.constant dense<true> : vector<4x256xi1>
    %45 = arith.xori %44, %cst_13 : vector<4x256xi1>
    %cst_14 = arith.constant 1.000000e+00 : f32
    %46 = vector.broadcast %cst_14 : f32 to vector<4x256xf32>
    %47 = arith.select %45, %46, %35 : vector<4x256xi1>, vector<4x256xf32>
    %cst_15 = arith.constant 1.000000e+00 : f32
    %48 = vector.broadcast %cst_15 : f32 to vector<4x256xf32>
    %49 = arith.addf %48, %35 : vector<4x256xf32>
    %50 = tpu.reciprocal %49 {approx = true} : vector<4x256xf32> -> vector<4x256xf32>
    %51 = arith.mulf %47, %50 : vector<4x256xf32>
    %cst_16 = arith.constant 1.000000e+00 : f32
    %52 = vector.broadcast %cst_16 : f32 to vector<4x256xf32>
    %53 = arith.subf %52, %51 : vector<4x256xf32>
    %54 = arith.mulf %53, %53 : vector<4x256xf32>
    %55 = arith.mulf %54, %41 : vector<4x256xf32>
    %cst_17 = arith.constant dense<0.000000e+00> : vector<256xf32>
    %56 = vector.multi_reduction <add>, %55, %cst_17 [0] : vector<4x256xf32> to vector<256xf32>
    %57 = vector.shape_cast %56 : vector<256xf32> to vector<1x256xf32>
    %c0_18 = arith.constant 0 : index
    %c0_19 = arith.constant 0 : index
    %c0_20 = arith.constant 0 : index
    %58 = vector.load %arg4[%c0_18, %c0_19, %c0_20] : memref<1x3x256xf32, #tpu.memory_space<vmem>>, vector<1x1x256xf32>
    %59 = vector.shape_cast %58 : vector<1x1x256xf32> to vector<1x256xf32>
    %60 = arith.addf %59, %26 : vector<1x256xf32>
    %c0_21 = arith.constant 0 : index
    %c0_22 = arith.constant 0 : index
    %c0_23 = arith.constant 0 : index
    %61 = vector.load %arg4[%c0_21, %c0_22, %c0_23] : memref<1x3x256xf32, #tpu.memory_space<vmem>>, vector<1x1x256xf32>
    %62 = vector.shape_cast %61 : vector<1x1x256xf32> to vector<1x256xf32>
    %63 = vector.shape_cast %60 : vector<1x256xf32> to vector<1x1x256xf32>
    tpu.vector_store %arg4[%c0_21, %c0_22, %c0_23], %63 {strides = array<i32>} : memref<1x3x256xf32, #tpu.memory_space<vmem>>, vector<1x1x256xf32>,
    %c0_24 = arith.constant 0 : index
    %c1 = arith.constant 1 : index
    %c0_25 = arith.constant 0 : index
    %64 = vector.load %arg4[%c0_24, %c1, %c0_25] : memref<1x3x256xf32, #tpu.memory_space<vmem>>, vector<1x1x256xf32>
    %65 = vector.shape_cast %64 : vector<1x1x256xf32> to vector<1x256xf32>
    %66 = arith.addf %65, %31 : vector<1x256xf32>
    %c0_26 = arith.constant 0 : index
    %c1_27 = arith.constant 1 : index
    %c0_28 = arith.constant 0 : index
    %67 = vector.load %arg4[%c0_26, %c1_27, %c0_28] : memref<1x3x256xf32, #tpu.memory_space<vmem>>, vector<1x1x256xf32>
    %68 = vector.shape_cast %67 : vector<1x1x256xf32> to vector<1x256xf32>
    %69 = vector.shape_cast %66 : vector<1x256xf32> to vector<1x1x256xf32>
    tpu.vector_store %arg4[%c0_26, %c1_27, %c0_28], %69 {strides = array<i32>} : memref<1x3x256xf32, #tpu.memory_space<vmem>>, vector<1x1x256xf32>,
    %c0_29 = arith.constant 0 : index
    %c2 = arith.constant 2 : index
    %c0_30 = arith.constant 0 : index
    %70 = vector.load %arg4[%c0_29, %c2, %c0_30] : memref<1x3x256xf32, #tpu.memory_space<vmem>>, vector<1x1x256xf32>
    %71 = vector.shape_cast %70 : vector<1x1x256xf32> to vector<1x256xf32>
    %72 = arith.addf %71, %57 : vector<1x256xf32>
    %c0_31 = arith.constant 0 : index
    %c2_32 = arith.constant 2 : index
    %c0_33 = arith.constant 0 : index
    %73 = vector.load %arg4[%c0_31, %c2_32, %c0_33] : memref<1x3x256xf32, #tpu.memory_space<vmem>>, vector<1x1x256xf32>
    %74 = vector.shape_cast %73 : vector<1x1x256xf32> to vector<1x256xf32>
    %75 = vector.shape_cast %72 : vector<1x256xf32> to vector<1x1x256xf32>
    tpu.vector_store %arg4[%c0_31, %c2_32, %c0_33], %75 {strides = array<i32>} : memref<1x3x256xf32, #tpu.memory_space<vmem>>, vector<1x1x256xf32>,
    %c0_34 = arith.constant 0 : index
    %c0_35 = arith.constant 0 : index
    %c0_36 = arith.constant 0 : index
    %76 = vector.load %arg5[%c0_34, %c0_35, %c0_36] : memref<1x4x256xf32, #tpu.memory_space<vmem>>, vector<1x4x256xf32>
    %77 = vector.shape_cast %76 : vector<1x4x256xf32> to vector<4x256xf32>
    %78 = arith.mulf %22, %11 : vector<4x256xf32>
    %79 = arith.addf %77, %78 : vector<4x256xf32>
    %c0_37 = arith.constant 0 : index
    %c0_38 = arith.constant 0 : index
    %c0_39 = arith.constant 0 : index
    %80 = vector.load %arg5[%c0_37, %c0_38, %c0_39] : memref<1x4x256xf32, #tpu.memory_space<vmem>>, vector<1x4x256xf32>
    %81 = vector.shape_cast %80 : vector<1x4x256xf32> to vector<4x256xf32>
    %82 = vector.shape_cast %79 : vector<4x256xf32> to vector<1x4x256xf32>
    tpu.vector_store %arg5[%c0_37, %c0_38, %c0_39], %82 {strides = array<i32>} : memref<1x4x256xf32, #tpu.memory_space<vmem>>, vector<1x4x256xf32>,
    %c0_40 = arith.constant 0 : index
    %c0_41 = arith.constant 0 : index
    %c0_42 = arith.constant 0 : index
    %83 = vector.load %arg6[%c0_40, %c0_41, %c0_42] : memref<1x4x256xf32, #tpu.memory_space<vmem>>, vector<1x4x256xf32>
    %84 = vector.shape_cast %83 : vector<1x4x256xf32> to vector<4x256xf32>
    %85 = arith.addf %22, %11 : vector<4x256xf32>
    %86 = arith.addf %84, %85 : vector<4x256xf32>
    %c0_43 = arith.constant 0 : index
    %c0_44 = arith.constant 0 : index
    %c0_45 = arith.constant 0 : index
    %87 = vector.load %arg6[%c0_43, %c0_44, %c0_45] : memref<1x4x256xf32, #tpu.memory_space<vmem>>, vector<1x4x256xf32>
    %88 = vector.shape_cast %87 : vector<1x4x256xf32> to vector<4x256xf32>
    %89 = vector.shape_cast %86 : vector<4x256xf32> to vector<1x4x256xf32>
    tpu.vector_store %arg6[%c0_43, %c0_44, %c0_45], %89 {strides = array<i32>} : memref<1x4x256xf32, #tpu.memory_space<vmem>>, vector<1x4x256xf32>,
    return
  }
  func.func @transform_0(%arg0: i32, %arg1: i32) -> (i32, i32, i32) {
    %c0_i32 = arith.constant 0 : i32
    %c0_i32_0 = arith.constant 0 : i32
    return %arg0, %c0_i32, %arg1 : i32, i32, i32
  }
  func.func @transform_1(%arg0: i32, %arg1: i32) -> (i32, i32, i32) {
    %c0_i32 = arith.constant 0 : i32
    %c0_i32_0 = arith.constant 0 : i32
    return %arg0, %c0_i32, %arg1 : i32, i32, i32
  }
  func.func @transform_2(%arg0: i32, %arg1: i32) -> (i32, i32, i32) {
    %c0_i32 = arith.constant 0 : i32
    %c0_i32_0 = arith.constant 0 : i32
    %c0_i32_1 = arith.constant 0 : i32
    return %arg0, %c0_i32, %c0_i32_0 : i32, i32, i32
  }
  func.func @transform_3(%arg0: i32, %arg1: i32) -> (i32, i32, i32) {
    %c0_i32 = arith.constant 0 : i32
    %c0_i32_0 = arith.constant 0 : i32
    %c0_i32_1 = arith.constant 0 : i32
    return %arg0, %c0_i32, %c0_i32_0 : i32, i32, i32
  }
  func.func @transform_4(%arg0: i32, %arg1: i32) -> (i32, i32, i32) {
    %c0_i32 = arith.constant 0 : i32
    %c0_i32_0 = arith.constant 0 : i32
    %c0_i32_1 = arith.constant 0 : i32
    return %arg0, %c0_i32, %c0_i32_0 : i32, i32, i32
  }
}

</mosaic_0001>

<llo_original>
// kernel: tpu_custom_call.1
$region0: #{tpu_custom_call.1}
  #allocation0 [shape = 'u32[]', space=smem, size = 0x4, offset = 0x4, fixed_abs, tag = 'smem constant byte address 0x4 - core index']
  #allocation1 [shape = 'u32[144,128]{1,0:T(1,128)}', space=vmem, size = 0x12000, scoped, tag = 'internal scratch']
  %s0 = inlined_call_operand.hbm [shape: f32[2,4,256], index: 0, kind: input, shape index: {}]
  %s1 = inlined_call_operand.hbm [shape: s32[2,1,256], index: 1, kind: input, shape index: {}]
  %s2 = inlined_call_operand.vmem [shape: f32[2,3,256], index: 2, kind: output, shape index: {0}]
  %s3 = inlined_call_operand.hbm [shape: f32[2,4,256], index: 3, kind: output, shape index: {1}]
  %s4 = inlined_call_operand.hbm [shape: f32[2,4,256], index: 4, kind: output, shape index: {2}]
  %5 = xla_tuple %s2, %s3, %s4
  %s6 = sld [smem:[#allocation0]]
  $region69: #{tpu_custom_call.1} parent=0
    _
  %s8 = ssub.s32 1, %s6
  %s9 = scalar_select 0, %s8, %s6
  $region1: #{tpu_custom_call.1} parent=0
    #allocation2 [shape = 'u8[8192]{0}', space=vmem, size = 0x2000, scoped, tag = 'input window, operand 0']
    #allocation3 [shape = 's32[2]{0}', space=sflag, size = 0x8, scoped, tag = 'scoped memory for tpu_custom_call.1']
    #allocation4 [shape = 's32[2]{0}', space=sflag, size = 0x8, scoped, tag = 'scoped memory for tpu_custom_call.1']
    #allocation5 [shape = 'u8[2048]{0}', space=vmem, size = 0x800, scoped, tag = 'input window, operand 1']
    #allocation6 [shape = 's32[2]{0}', space=sflag, size = 0x8, scoped, tag = 'scoped memory for tpu_custom_call.1']
    #allocation7 [shape = 'u8[8192]{0}', space=vmem, size = 0x2000, scoped, tag = 'output window, operand 1']
    #allocation8 [shape = 'u8[8192]{0}', space=vmem, size = 0x2000, scoped, tag = 'output window, operand 2']
    #allocation9 [shape = 's32[2]{0}', space=sflag, size = 0x8, scoped, tag = 'scoped memory for tpu_custom_call.1']
    %10 = vsyncpa [#allocation3], 0
    %s11 = scalar_lea.sflag [#allocation3], 1
    %12 = vsyncpa %s11, 0
    %13 = vsyncpa [#allocation6], 0
    %s14 = scalar_lea.sflag [#allocation6], 1
    %15 = vsyncpa %s14, 0
    %16 = vsyncpa [#allocation4], 0
    %s17 = scalar_lea.sflag [#allocation4], 1
    %18 = vsyncpa %s17, 0
    %19 = vsyncpa [#allocation9], 0
    %s20 = scalar_lea.sflag [#allocation9], 1
    %21 = vsyncpa %s20, 0
    loop: start=0, step=1, limit=4
    $region2: #{tpu_custom_call.1} parent=1 // loop_pre_header
      _
    $region3: #{tpu_custom_call.1} parent=1 // loop_header
      %s23 = sphi 0, %s27
      %p24 = scmp.ge.s32.totalorder %s23, 4
      %s30 = sphi 0, %s42
      %s31 = sphi 0, %s38
      %s32 = sphi 0, %s30
      %s33 = sphi 0, %s31
      %s34 = sphi 0, %s32
      %s35 = sphi 0, %s33
      %s47 = sphi 0, %s49
      %s50 = sphi 0, %s47
      %s51 = sphi 0, %s50
      %s67 = sphi 0, %s51
      %s75 = sphi 0, %s77
      %s78 = sphi 0, %s75
      %s79 = sphi 0, %s78
      %s95 = sphi 0, %s79
      %s101 = sphi 0, %s103
      %s104 = sphi 0, %s101
      %s105 = sphi 0, %s104
      %s121 = sphi 0, %s105
      %s127 = sphi 0, %s129
      %s130 = sphi 0, %s127
      %s131 = sphi 0, %s130
      %s147 = sphi 0, %s131
      %s153 = sphi 0, %s155
      %s156 = sphi 0, %s153
      %s157 = sphi 0, %s156
      %s173 = sphi 0, %s157
    $region4: #{tpu_custom_call.1} parent=1 // loop_header_branch
      %26 = sbr.rel (%p24) target = $region8
    $region5: #{tpu_custom_call.1} parent=1 // loop_body
      %s28 = ssub.s32 %s23, 1
      %s29 = ssub.s32 %s23, 2
      %s36 = sadd.s32 1, %s31
      %p37 = scmp.ge.s32.totalorder %s36, 1
      %s38 = scalar_select %p37, 0, %s36
      %s39 = sadd.s32 1, %s30
      %s40 = scalar_select %p37, %s39, %s30
      %p41 = scmp.ge.s32.totalorder %s40, 2
      %s42 = scalar_select %p41, 0, %s40
      %s43 = ssub.s32 %s30, %s42
      %s44 = ssub.s32 %s31, %s38
      %s45 = sor.u32 %s43, %s44
      %p46 = scmp.eq.s32.totalorder %s45, 0
      %s48 = sadd.s32 %s47, 1
      %s49 = scalar_select %p46, %s47, %s48
      %p52 = pneg %p46
      %p53 = scmp.eq.s32.totalorder %s23, 1
      %p54 = por %p52, %p53
      %p55 = scmp.ne.s32.totalorder %s47, %s50
      %p56 = scmp.eq.s32.totalorder %s23, 0
      %p57 = por %p55, %p56
      %p58 = scmp.ne.s32.totalorder %s47, %s50
      %p59 = scmp.eq.s32.totalorder %s28, 1
      %p60 = por %p58, %p59
      %p61 = scmp.ne.s32.totalorder %s50, %s51
      %p62 = scmp.eq.s32.totalorder %s28, 0
      %p63 = por %p61, %p62
      %p64 = scmp.ne.s32.totalorder %s50, %s51
      %p65 = scmp.eq.s32.totalorder %s29, 1
      %p66 = por %p64, %p65
      %p68 = scmp.ne.s32.totalorder %s51, %s67
      %p69 = scmp.eq.s32.totalorder %s29, 0
      %p70 = por %p68, %p69
      %s71 = ssub.s32 %s30, %s42
      %s72 = ssub.s32 %s31, %s38
      %s73 = sor.u32 %s71, %s72
      %p74 = scmp.eq.s32.totalorder %s73, 0
      %s76 = sadd.s32 %s75, 1
      %s77 = scalar_select %p74, %s75, %s76
      %p80 = pneg %p74
      %p81 = scmp.eq.s32.totalorder %s23, 1
      %p82 = por %p80, %p81
      %p83 = scmp.ne.s32.totalorder %s75, %s78
      %p84 = scmp.eq.s32.totalorder %s23, 0
      %p85 = por %p83, %p84
      %p86 = scmp.ne.s32.totalorder %s75, %s78
      %p87 = scmp.eq.s32.totalorder %s28, 1
      %p88 = por %p86, %p87
      %p89 = scmp.ne.s32.totalorder %s78, %s79
      %p90 = scmp.eq.s32.totalorder %s28, 0
      %p91 = por %p89, %p90
      %p92 = scmp.ne.s32.totalorder %s78, %s79
      %p93 = scmp.eq.s32.totalorder %s29, 1
      %p94 = por %p92, %p93
      %p96 = scmp.ne.s32.totalorder %s79, %s95
      %p97 = scmp.eq.s32.totalorder %s29, 0
      %p98 = por %p96, %p97
      %s99 = ssub.s32 %s30, %s42
      %p100 = scmp.eq.s32.totalorder %s99, 0
      %s102 = sadd.s32 %s101, 1
      %s103 = scalar_select %p100, %s101, %s102
      %p106 = pneg %p100
      %p107 = scmp.eq.s32.totalorder %s23, 1
      %p108 = por %p106, %p107
      %p109 = scmp.ne.s32.totalorder %s101, %s104
      %p110 = scmp.eq.s32.totalorder %s23, 0
      %p111 = por %p109, %p110
      %p112 = scmp.ne.s32.totalorder %s101, %s104
      %p113 = scmp.eq.s32.totalorder %s28, 1
      %p114 = por %p112, %p113
      %p115 = scmp.ne.s32.totalorder %s104, %s105
      %p116 = scmp.eq.s32.totalorder %s28, 0
      %p117 = por %p115, %p116
      %p118 = scmp.ne.s32.totalorder %s104, %s105
      %p119 = scmp.eq.s32.totalorder %s29, 1
      %p120 = por %p118, %p119
      %p122 = scmp.ne.s32.totalorder %s105, %s121
      %p123 = scmp.eq.s32.totalorder %s29, 0
      %p124 = por %p122, %p123
      %s125 = ssub.s32 %s30, %s42
      %p126 = scmp.eq.s32.totalorder %s125, 0
      %s128 = sadd.s32 %s127, 1
      %s129 = scalar_select %p126, %s127, %s128
      %p132 = pneg %p126
      %p133 = scmp.eq.s32.totalorder %s23, 1
      %p134 = por %p132, %p133
      %p135 = scmp.ne.s32.totalorder %s127, %s130
      %p136 = scmp.eq.s32.totalorder %s23, 0
      %p137 = por %p135, %p136
      %p138 = scmp.ne.s32.totalorder %s127, %s130
      %p139 = scmp.eq.s32.totalorder %s28, 1
      %p140 = por %p138, %p139
      %p141 = scmp.ne.s32.totalorder %s130, %s131
      %p142 = scmp.eq.s32.totalorder %s28, 0
      %p143 = por %p141, %p142
      %p144 = scmp.ne.s32.totalorder %s130, %s131
      %p145 = scmp.eq.s32.totalorder %s29, 1
      %p146 = por %p144, %p145
      %p148 = scmp.ne.s32.totalorder %s131, %s147
      %p149 = scmp.eq.s32.totalorder %s29, 0
      %p150 = por %p148, %p149
      %s151 = ssub.s32 %s30, %s42
      %p152 = scmp.eq.s32.totalorder %s151, 0
      %s154 = sadd.s32 %s153, 1
      %s155 = scalar_select %p152, %s153, %s154
      %p158 = pneg %p152
      %p159 = scmp.eq.s32.totalorder %s23, 1
      %p160 = por %p158, %p159
      %p161 = scmp.ne.s32.totalorder %s153, %s156
      %p162 = scmp.eq.s32.totalorder %s23, 0
      %p163 = por %p161, %p162
      %p164 = scmp.ne.s32.totalorder %s153, %s156
      %p165 = scmp.eq.s32.totalorder %s28, 1
      %p166 = por %p164, %p165
      %p167 = scmp.ne.s32.totalorder %s156, %s157
      %p168 = scmp.eq.s32.totalorder %s28, 0
      %p169 = por %p167, %p168
      %p170 = scmp.ne.s32.totalorder %s156, %s157
      %p171 = scmp.eq.s32.totalorder %s29, 1
      %p172 = por %p170, %p171
      %p174 = scmp.ne.s32.totalorder %s157, %s173
      %p175 = scmp.eq.s32.totalorder %s29, 0
      %p176 = por %p174, %p175
      %p177 = scmp.le.s32.totalorder 1, %s23
      %p178 = scmp.lt.s32.totalorder %s23, 3
      %p179 = pnand %p177, %p178
      %p180 = pneg %p179
      // Predicated region
      $region9: #{tpu_custom_call.1} parent=5 // pred_check
        _
      $region10: #{tpu_custom_call.1} parent=5 // pred_check_branch
        %182 = sbr.rel (%p179) target = $region12
      $region11: #{tpu_custom_call.1} parent=5 // pred_region
        %s183 = ssub.s32 %s23, 1
      $region12: #{tpu_custom_call.1} parent=5 // pred_fallthru
        _
      %p184 = scmp.lt.s32.totalorder %s23, 2
      // Predicated region
      $region13: #{tpu_custom_call.1} parent=5 // pred_check
        %p185 = pneg %p184
      $region14: #{tpu_custom_call.1} parent=5 // pred_check_branch
        %187 = sbr.rel (%p185) target = $region16
      $region15: #{tpu_custom_call.1} parent=5 // pred_region
        // Predicated region
        $region17: #{tpu_custom_call.1} parent=15 // pred_check
          %p188 = pneg %p57
        $region18: #{tpu_custom_call.1} parent=15 // pred_check_branch
          %190 = sbr.rel (%p188) target = $region20
        $region19: #{tpu_custom_call.1} parent=15 // pred_region
          %s191 = sand.u32 %s47, 1
          %s192 = scalar_lea.sflag [#allocation3], %s191
          %s193 = sand.u32 %s47, 1
          %s194 = smul.addr %s193, 8
          %s195 = scalar_lea.vmem [#allocation2], %s194
          %s196 = smul.u32 2, %s31
          %s198 = ssub.s32 128, 128
          %199 = vsyncadd %s192, %s198
          %s200 = smul.addr %s30, 2
          %s201 = sadd.s32 %s196, %s200
          %s202 = smul.addr %s201, 64
          %s203 = scalar_lea.hbm %s0, %s202
          %s205 = sshll.u32 %s195, 4
          %s206 = int_to_ptr.vmem [resolvable:$true] %s205
          %208 = dma.hbm_to_vmem [thread:$0]  %s203, 128, %s206, %s192
        $region20: #{tpu_custom_call.1} parent=15 // pred_fallthru
          _
        // Predicated region
        $region21: #{tpu_custom_call.1} parent=15 // pred_check
          %p209 = pneg %p85
        $region22: #{tpu_custom_call.1} parent=15 // pred_check_branch
          %211 = sbr.rel (%p209) target = $region24
        $region23: #{tpu_custom_call.1} parent=15 // pred_region
          %s212 = sand.u32 %s75, 1
          %s213 = scalar_lea.sflag [#allocation6], %s212
          %s214 = sand.u32 %s75, 1
          %s215 = smul.addr %s214, 2
          %s216 = scalar_lea.vmem [#allocation5], %s215
          %s217 = smul.u32 2, %s31
          %s219 = ssub.s32 32, 32
          %220 = vsyncadd %s213, %s219
          %s221 = smul.addr %s30, 2
          %s222 = sadd.s32 %s217, %s221
          %s223 = smul.addr %s222, 16
          %s224 = scalar_lea.hbm %s1, %s223
          %s226 = sshll.u32 %s216, 4
          %s227 = int_to_ptr.vmem [resolvable:$true] %s226
          %229 = dma.hbm_to_vmem [thread:$0]  %s224, 32, %s227, %s213
        $region24: #{tpu_custom_call.1} parent=15 // pred_fallthru
          _
      $region16: #{tpu_custom_call.1} parent=5 // pred_fallthru
        _
      %p230 = scmp.le.s32.totalorder 1, %s23
      %p231 = scmp.lt.s32.totalorder %s23, 3
      %p232 = pnand %p230, %p231
      %p233 = pneg %p232
      // Predicated region
      $region25: #{tpu_custom_call.1} parent=5 // pred_check
        _
      $region26: #{tpu_custom_call.1} parent=5 // pred_check_branch
        %235 = sbr.rel (%p232) target = $region28
      $region27: #{tpu_custom_call.1} parent=5 // pred_region
        %s236 = ssub.s32 %s23, 1
        %s237 = sand.u32 %s50, 1
        %s238 = scalar_lea.sflag [#allocation3], %s237
        %s239 = sand.u32 %s50, 1
        %s240 = smul.addr %s239, 8
        %s241 = scalar_lea.vmem [#allocation2], %s240
        // Predicated region
        $region29: #{tpu_custom_call.1} parent=27 // pred_check
          %p242 = pneg %p63
        $region30: #{tpu_custom_call.1} parent=27 // pred_check_branch
          %244 = sbr.rel (%p242) target = $region32
        $region31: #{tpu_custom_call.1} parent=27 // pred_region
          %245 = dma.done %s238, 128
        $region32: #{tpu_custom_call.1} parent=27 // pred_fallthru
          _
        %s246 = sand.u32 %s78, 1
        %s247 = scalar_lea.sflag [#allocation6], %s246
        %s248 = sand.u32 %s78, 1
        %s249 = smul.addr %s248, 2
        %s250 = scalar_lea.vmem [#allocation5], %s249
        // Predicated region
        $region33: #{tpu_custom_call.1} parent=27 // pred_check
          %p251 = pneg %p91
        $region34: #{tpu_custom_call.1} parent=27 // pred_check_branch
          %253 = sbr.rel (%p251) target = $region36
        $region35: #{tpu_custom_call.1} parent=27 // pred_region
          %254 = dma.done %s247, 32
        $region36: #{tpu_custom_call.1} parent=27 // pred_fallthru
          _
        %s255 = sand.u32 %s50, 1
        %s256 = scalar_lea.sflag [#allocation3], %s255
        %s257 = sand.u32 %s50, 1
        %s258 = smul.addr %s257, 8
        %s259 = scalar_lea.vmem [#allocation2], %s258
        %p260 = pneg %p63
        %p261 = pneg %p60
        %s262 = sand.u32 %s78, 1
        %s263 = scalar_lea.sflag [#allocation6], %s262
        %s264 = sand.u32 %s78, 1
        %s265 = smul.addr %s264, 2
        %s266 = scalar_lea.vmem [#allocation5], %s265
        %p267 = pneg %p91
        %p268 = pneg %p88
        %p269 = pneg %p117
        %p270 = pneg %p114
        %p271 = scmp.lt.s32.totalorder %s32, 1
        %s272 = scalar_select %p271, %s32, 1
        %s273 = smul.addr %s272, 2
        %s274 = smul.addr %s273, 4
        %s275 = scalar_lea.vmem %s2, %s274
        %p276 = pneg %p143
        %p277 = pneg %p140
        %s278 = sand.u32 %s130, 1
        %s279 = scalar_lea.sflag [#allocation4], %s278
        %s280 = sand.u32 %s130, 1
        %s281 = smul.addr %s280, 8
        %s282 = scalar_lea.vmem [#allocation7], %s281
        %p283 = pneg %p169
        %p284 = pneg %p166
        %s285 = sand.u32 %s156, 1
        %s286 = scalar_lea.sflag [#allocation9], %s285
        %s287 = sand.u32 %s156, 1
        %s288 = smul.addr %s287, 8
        %s289 = scalar_lea.vmem [#allocation8], %s288
        %s290 = smul.u32 2, %s33
        %s291 = smul.u32 2, %s33
        %p292 = scmp.lt.s32.totalorder %s32, 1
        %s293 = scalar_select %p292, %s32, 1
        %s294 = smul.addr %s293, 2
        %s295 = smul.addr %s294, 4
        %s296 = scalar_lea.vmem %s2, %s295
        %p297 = scmp.eq.s32.totalorder %s33, 0
        // Predicated region
        $region37: #{tpu_custom_call.1} parent=27 // pred_check
          %p298 = pneg %p297
        $region38: #{tpu_custom_call.1} parent=27 // pred_check_branch
          %300 = sbr.rel (%p298) target = $region40
        $region39: #{tpu_custom_call.1} parent=27 // pred_region
          %301 = vst [vmem:[%s296] sm:$0x77] 0.0
          %302 = vst [vmem:[%s282] sm:$0xff] 0.0
          %303 = vst [vmem:[%s289] sm:$0xff] 0.0
        $region40: #{tpu_custom_call.1} parent=27 // pred_fallthru
          _
        %v304 = vld [vmem:[%s241] sm:$0xff]
        %v305 = vld [vmem:[%s250] sm:$0x3]
        %v306 = vlaneseq
        %v307 = vshrl.u32 %v306, 7
        %v308 = vlaneseq
        %v309 = vshrl.u32 %v308, 7
        %v310 = vsub.s32 0, %v309
        %v311 = vrot.slane %v305, %v310
        %v312 = vlaneseq
        %v313 = vshrl.u32 %v312, 7
        %v314 = vsub.s32 1, %v313
        %v315 = vrot.slane %v305, %v314
        %vm316 = vcmp.eq.s32.totalorder %v311, %v307
        %vm317 = vcmp.eq.s32.totalorder %v315, %v307
        %v318 = vsel %vm316, 1, 0
        %v319 = vsel %vm317, 1, 0
        %v320 = vcvt.s32.f32 %v318
        %v321 = vcvt.s32.f32 %v319
        %v323 = vcombine.high %v304, %v304
        %vm325 = vcmask 1043456
        %v326 = vsel %vm325, %v304, -inf
        %v327 = vrot.slane %v326, 4
        %v328 = vmax.f32 %v326, %v327
        %v329 = vrot.slane %v328, 2
        %v330 = vmax.f32 %v328, %v329
        %v331 = vrot.slane %v330, 1
        %v332 = vmax.f32 %v330, %v331
        %v333 = vsel %vm325, %v323, -inf
        %v334 = vrot.slane %v333, 4
        %v335 = vmax.f32 %v333, %v334
        %v336 = vrot.slane %v335, 2
        %v337 = vmax.f32 %v335, %v336
        %v338 = vrot.slane %v337, 1
        %v339 = vmax.f32 %v337, %v338
        %v342 = vcombine.low %v332, %v339
        %v344 = vsub.f32 %v304, %v342
        %v345 = vmul.f32 %v344, 1.442695
        %v346 = vpow.pop %v345
        %v348 = vcombine.high %v346, %v346
        %v350 = vsel %vm325, %v346, 0.0
        %v351 = vrot.slane %v350, 4
        %v352 = vadd.f32 %v350, %v351
        %v353 = vrot.slane %v352, 2
        %v354 = vadd.f32 %v352, %v353
        %v355 = vrot.slane %v354, 1
        %v356 = vadd.f32 %v354, %v355
        %v357 = vsel %vm325, %v348, 0.0
        %v358 = vrot.slane %v357, 4
        %v359 = vadd.f32 %v357, %v358
        %v360 = vrot.slane %v359, 2
        %v361 = vadd.f32 %v359, %v360
        %v362 = vrot.slane %v361, 1
        %v363 = vadd.f32 %v361, %v362
        %v364 = vlog2.pop %v356
        %v365 = vmul.f32 %v364, 0.6931472
        %v366 = vlog2.pop %v363
        %v367 = vmul.f32 %v366, 0.6931472
        %v368 = vrcp.pop %v356
        %v369 = vrcp.pop %v363
        %v372 = vcombine.low %v368, %v369
        %v374 = vmul.f32 %v346, %v372
        %v376 = vcombine.high %v344, %v344
        %v378 = vmul.f32 %v320, %v344
        %v379 = vmul.f32 %v321, %v376
        %v380 = vsel %vm325, %v378, 0.0
        %v381 = vrot.slane %v380, 4
        %v382 = vadd.f32 %v380, %v381
        %v383 = vrot.slane %v382, 2
        %v384 = vadd.f32 %v382, %v383
        %v385 = vrot.slane %v384, 1
        %v386 = vadd.f32 %v384, %v385
        %v387 = vsel %vm325, %v379, 0.0
        %v388 = vrot.slane %v387, 4
        %v389 = vadd.f32 %v387, %v388
        %v390 = vrot.slane %v389, 2
        %v391 = vadd.f32 %v389, %v390
        %v392 = vrot.slane %v391, 1
        %v393 = vadd.f32 %v391, %v392
        %v394 = vsub.f32 %v365, %v386
        %v395 = vsub.f32 %v367, %v393
        %v396 = vmul.f32 %v365, 4.0
        %v397 = vmul.f32 %v367, 4.0
        %v398 = vsel %vm325, %v344, 0.0
        %v399 = vrot.slane %v398, 4
        %v400 = vadd.f32 %v398, %v399
        %v401 = vrot.slane %v400, 2
        %v402 = vadd.f32 %v400, %v401
        %v403 = vrot.slane %v402, 1
        %v404 = vadd.f32 %v402, %v403
        %v405 = vsel %vm325, %v376, 0.0
        %v406 = vrot.slane %v405, 4
        %v407 = vadd.f32 %v405, %v406
        %v408 = vrot.slane %v407, 2
        %v409 = vadd.f32 %v407, %v408
        %v410 = vrot.slane %v409, 1
        %v411 = vadd.f32 %v409, %v410
        %v412 = vsub.f32 %v396, %v404
        %v413 = vsub.f32 %v397, %v411
        %v414 = vand.u32 2147483647, %v304
        %v415 = vsub.f32 0.0, %v414
        %v416 = vmul.f32 %v415, 1.442695
        %v417 = vpow.pop %v416
        %v418 = vmax.f32 %v304, 0.0
        %v421 = vcombine.low %v320, %v321
        %v423 = vmul.f32 %v304, %v421
        %v424 = vsub.f32 %v418, %v423
        %v425 = vadd.f32 %v417, 1.0
        %v426 = vlog2.pop %v425
        %v427 = vmul.f32 %v426, 0.6931472
        %v428 = vmul.f32 -0.5, %v417
        %v429 = vadd.f32 %v428, 1.0
        %v430 = vmul.f32 %v429, %v417
        %v431 = vand.u32 2147483647, %v417
        %vm432 = vcmp.lt.f32.partialorder %v431, 0.0004427343
        %v433 = vsel %vm432, %v430, %v427
        %v434 = vadd.f32 %v424, %v433
        %vm435 = vcmp.ge.f32.partialorder %v304, 0.0
        %v436 = vcombine.low %v318, %v319
        %vm437 = vcmp.ne.s32.totalorder %v436, 0
        %vm438 = vmxor %vm435, %vm437
        %vm439 = vmxor %vm438, 1
        %v440 = vsel %vm439, 1.0, %v417
        %v441 = vadd.f32 %v417, 1.0
        %v442 = vrcp.pop %v441
        %v443 = vmul.f32 %v440, %v442
        %v444 = vsub.f32 1.0, %v443
        %v445 = vmul.f32 %v444, %v444
        %v446 = vmul.f32 %v445, %v434
        %v448 = vcombine.high %v446, %v446
        %v450 = vsel %vm325, %v446, 0.0
        %v451 = vrot.slane %v450, 4
        %v452 = vadd.f32 %v450, %v451
        %v453 = vrot.slane %v452, 2
        %v454 = vadd.f32 %v452, %v453
        %v455 = vrot.slane %v454, 1
        %v456 = vadd.f32 %v454, %v455
        %v457 = vsel %vm325, %v448, 0.0
        %v458 = vrot.slane %v457, 4
        %v459 = vadd.f32 %v457, %v458
        %v460 = vrot.slane %v459, 2
        %v461 = vadd.f32 %v459, %v460
        %v462 = vrot.slane %v461, 1
        %v463 = vadd.f32 %v461, %v462
        %v464 = vld [vmem:[%s296] ss:$4 sm:$0x3]
        %v467 = vcombine.low %v394, %v395
        %v469 = vunpack.c.l.s4 1966171168
        %v470 = vunpack.c.0.s8 %v469
        %v471 = vlaneseq
        %v472 = vshrl.u32 %v471, 7
        %v473 = vsub.s32 %v470, %v472
        %v474 = vrot.slane %v467, %v473
        %v476 = vunpack.c.l.s4 1966171168
        %v477 = vunpack.c.0.s8 %v476
        %v478 = vlaneseq
        %v479 = vshrl.u32 %v478, 7
        %v480 = vsub.s32 %v477, %v479
        %v481 = vrot.slane %v474, %v480
        %v483 = vadd.f32 %v464, %v481
        %v484 = vlaneseq
        %vm485 = vcmp.ge.s32.totalorder %v484, 0
        %vm486 = vcmp.lt.s32.totalorder %v484, 256
        %vm487 = vmand %vm485, %vm486
        %488 = vst.msk [vmem:[%s296] ss:$4 sm:$0x3] %vm487, %v483
        %s489 = scalar_lea.vmem %s296, 1
        %v490 = vld [vmem:[%s489] ss:$4 sm:$0x3]
        %v493 = vcombine.low %v412, %v413
        %v495 = vunpack.c.l.s4 1966171168
        %v496 = vunpack.c.0.s8 %v495
        %v497 = vlaneseq
        %v498 = vshrl.u32 %v497, 7
        %v499 = vsub.s32 %v496, %v498
        %v500 = vrot.slane %v493, %v499
        %v502 = vunpack.c.l.s4 1966171168
        %v503 = vunpack.c.0.s8 %v502
        %v504 = vlaneseq
        %v505 = vshrl.u32 %v504, 7
        %v506 = vsub.s32 %v503, %v505
        %v507 = vrot.slane %v500, %v506
        %v509 = vadd.f32 %v490, %v507
        %510 = vst.msk [vmem:[%s489] ss:$4 sm:$0x3] %vm487, %v509
        %s511 = scalar_lea.vmem %s296, 2
        %v512 = vld [vmem:[%s511] ss:$4 sm:$0x3]
        %v515 = vcombine.low %v456, %v463
        %v517 = vunpack.c.l.s4 1966171168
        %v518 = vunpack.c.0.s8 %v517
        %v519 = vlaneseq
        %v520 = vshrl.u32 %v519, 7
        %v521 = vsub.s32 %v518, %v520
        %v522 = vrot.slane %v515, %v521
        %v524 = vunpack.c.l.s4 1966171168
        %v525 = vunpack.c.0.s8 %v524
        %v526 = vlaneseq
        %v527 = vshrl.u32 %v526, 7
        %v528 = vsub.s32 %v525, %v527
        %v529 = vrot.slane %v522, %v528
        %v531 = vadd.f32 %v512, %v529
        %532 = vst.msk [vmem:[%s511] ss:$4 sm:$0x3] %vm487, %v531
        %v533 = vld [vmem:[%s282] sm:$0xff]
        %v534 = vmul.f32 %v374, %v421
        %v535 = vadd.f32 %v533, %v534
        %536 = vst [vmem:[%s282] sm:$0xff] %v535
        %v537 = vld [vmem:[%s289] sm:$0xff]
        %v538 = vadd.f32 %v374, %v421
        %v539 = vadd.f32 %v537, %v538
        %540 = vst [vmem:[%s289] sm:$0xff] %v539
        %p541 = scmp.lt.s32.totalorder %s32, 1
        %s542 = scalar_select %p541, %s32, 1
        %s543 = smul.addr %s542, 2
        %s544 = smul.addr %s543, 4
        %s545 = scalar_lea.vmem %s2, %s544
        %s546 = sand.u32 %s130, 1
        %s547 = scalar_lea.sflag [#allocation4], %s546
        %s548 = sand.u32 %s130, 1
        %s549 = smul.addr %s548, 8
        %s550 = scalar_lea.vmem [#allocation7], %s549
        %s551 = sand.u32 %s156, 1
        %s552 = scalar_lea.sflag [#allocation9], %s551
        %s553 = sand.u32 %s156, 1
        %s554 = smul.addr %s553, 8
        %s555 = scalar_lea.vmem [#allocation8], %s554
        // Predicated region
        $region41: #{tpu_custom_call.1} parent=27 // pred_check
          %p556 = pneg %p114
        $region42: #{tpu_custom_call.1} parent=27 // pred_check_branch
          %558 = sbr.rel (%p556) target = $region44
        $region43: #{tpu_custom_call.1} parent=27 // pred_region
          _
        $region44: #{tpu_custom_call.1} parent=27 // pred_fallthru
          _
        // Predicated region
        $region45: #{tpu_custom_call.1} parent=27 // pred_check
          %p559 = pneg %p140
        $region46: #{tpu_custom_call.1} parent=27 // pred_check_branch
          %561 = sbr.rel (%p559) target = $region48
        $region47: #{tpu_custom_call.1} parent=27 // pred_region
          %s563 = ssub.s32 128, 128
          %564 = vsyncadd %s547, %s563
          %s565 = smul.addr %s32, 2
          %s566 = smul.addr %s565, 64
          %s567 = scalar_lea.hbm %s3, %s566
          %s569 = sshll.u32 %s550, 4
          %s570 = int_to_ptr.vmem [resolvable:$true] %s569
          %572 = dma.vmem_to_hbm [thread:$0]  %s570, 128, %s567, %s547
        $region48: #{tpu_custom_call.1} parent=27 // pred_fallthru
          _
        // Predicated region
        $region49: #{tpu_custom_call.1} parent=27 // pred_check
          %p573 = pneg %p166
        $region50: #{tpu_custom_call.1} parent=27 // pred_check_branch
          %575 = sbr.rel (%p573) target = $region52
        $region51: #{tpu_custom_call.1} parent=27 // pred_region
          %s577 = ssub.s32 128, 128
          %578 = vsyncadd %s552, %s577
          %s579 = smul.addr %s32, 2
          %s580 = smul.addr %s579, 64
          %s581 = scalar_lea.hbm %s4, %s580
          %s583 = sshll.u32 %s555, 4
          %s584 = int_to_ptr.vmem [resolvable:$true] %s583
          %586 = dma.vmem_to_hbm [thread:$0]  %s584, 128, %s581, %s552
        $region52: #{tpu_custom_call.1} parent=27 // pred_fallthru
          _
      $region28: #{tpu_custom_call.1} parent=5 // pred_fallthru
        _
      %p587 = scmp.le.s32.totalorder 2, %s23
      // Predicated region
      $region53: #{tpu_custom_call.1} parent=5 // pred_check
        %p588 = pneg %p587
      $region54: #{tpu_custom_call.1} parent=5 // pred_check_branch
        %590 = sbr.rel (%p588) target = $region56
      $region55: #{tpu_custom_call.1} parent=5 // pred_region
        %s591 = ssub.s32 %s23, 2
        // Predicated region
        $region57: #{tpu_custom_call.1} parent=55 // pred_check
          %p592 = pneg %p120
        $region58: #{tpu_custom_call.1} parent=55 // pred_check_branch
          %594 = sbr.rel (%p592) target = $region60
        $region59: #{tpu_custom_call.1} parent=55 // pred_region
          %p595 = scmp.lt.s32.totalorder %s34, 1
          %s596 = scalar_select %p595, %s34, 1
          %s597 = smul.addr %s596, 2
          %s598 = smul.addr %s597, 4
          %s599 = scalar_lea.vmem %s2, %s598
        $region60: #{tpu_custom_call.1} parent=55 // pred_fallthru
          _
        // Predicated region
        $region61: #{tpu_custom_call.1} parent=55 // pred_check
          %p600 = pneg %p146
        $region62: #{tpu_custom_call.1} parent=55 // pred_check_branch
          %602 = sbr.rel (%p600) target = $region64
        $region63: #{tpu_custom_call.1} parent=55 // pred_region
          %s603 = sand.u32 %s131, 1
          %s604 = scalar_lea.sflag [#allocation4], %s603
          %s605 = sand.u32 %s131, 1
          %s606 = smul.addr %s605, 8
          %s607 = scalar_lea.vmem [#allocation7], %s606
          %608 = dma.done %s604, 128
        $region64: #{tpu_custom_call.1} parent=55 // pred_fallthru
          _
        // Predicated region
        $region65: #{tpu_custom_call.1} parent=55 // pred_check
          %p609 = pneg %p172
        $region66: #{tpu_custom_call.1} parent=55 // pred_check_branch
          %611 = sbr.rel (%p609) target = $region68
        $region67: #{tpu_custom_call.1} parent=55 // pred_region
          %s612 = sand.u32 %s157, 1
          %s613 = scalar_lea.sflag [#allocation9], %s612
          %s614 = sand.u32 %s157, 1
          %s615 = smul.addr %s614, 8
          %s616 = scalar_lea.vmem [#allocation8], %s615
          %617 = dma.done %s613, 128
        $region68: #{tpu_custom_call.1} parent=55 // pred_fallthru
          _
      $region56: #{tpu_custom_call.1} parent=5 // pred_fallthru
        _
    $region6: #{tpu_custom_call.1} parent=1 // loop_footer
      %s27 = sadd.s32 1, %s23
    $region7: #{tpu_custom_call.1} parent=1 // loop_footer_branch
      %22 = sbr.rel target = $region3
    $region8: #{tpu_custom_call.1} parent=1 // loop_exit
      _
    %618 = vsyncpa [#allocation3], 1
    %s619 = scalar_lea.sflag [#allocation3], 1
    %620 = vsyncpa %s619, 1
    %621 = vsyncpa [#allocation6], 1
    %s622 = scalar_lea.sflag [#allocation6], 1
    %623 = vsyncpa %s622, 1
    %624 = vsyncpa [#allocation4], 1
    %s625 = scalar_lea.sflag [#allocation4], 1
    %626 = vsyncpa %s625, 1
    %627 = vsyncpa [#allocation9], 1
    %s628 = scalar_lea.sflag [#allocation9], 1
    %629 = vsyncpa %s628, 1

</llo_original>
